<compile_context>
chip_gen: v6e
topology: v6e:2x2x1
jax: 0.10.0
libtpu: 0.0.40
codegen_flags: <defaults>
</compile_context>

<pallas_src>
import functools
import math

import jax
import jax.numpy as jnp
from jax import lax
from jax.experimental import pallas as pl
from jax.experimental.pallas import tpu as pltpu


_TWO_PI = 2.0 * math.pi
_TWO_PI_HI = 6.28125                 # few significand bits -> k * _TWO_PI_HI is exact
_TWO_PI_LO = _TWO_PI - _TWO_PI_HI
_INV_TWO_PI = 1.0 / _TWO_PI


def _pe_kernel(inv_freq_ref, phase_ref, soff_ref, o_ref, *, rpl: float):
    """Writes one (tile_rows, C) slab of the sinusoidal table.

    Layout is either the direct (S, D) table (C == D) or a lane-dense flat
    packing (C == 128, each lane row holds 128/D consecutive seq positions).
    Per-lane constants come in as resident (1, C) inputs; per element we only
    do a few VALU ops plus a single sin.
    """
    rows, cols = o_ref.shape
    r0 = (pl.program_id(0) * rows).astype(jnp.float32)

    inv_freq = inv_freq_ref[...]          # (1, C) per-lane frequency
    phase = phase_ref[...]                # (1, C): 0.0 (sin lanes) or pi/2 (cos lanes)
    s_off = soff_ref[...]                 # (1, C) per-lane seq offset within a lane row

    row = lax.broadcasted_iota(jnp.int32, (rows, cols), 0).astype(jnp.float32) + r0
    pos = (row * rpl if rpl != 1.0 else row) + s_off      # global seq position
    angle = pos * inv_freq

    # Cody-Waite reduction mod 2*pi so that adding the pi/2 phase (cos lanes)
    # stays accurate even for positions near max_len (single-sin kept).
    k = jnp.floor(angle * _INV_TWO_PI + 0.5)
    red = (angle - k * _TWO_PI_HI) - k * _TWO_PI_LO

    # TODO(synk): a seed-block + angle-addition recurrence could further cut the
    # per-element sin polynomial on v6e/v7x; kept single-sin for robustness.
    o_ref[...] = jnp.sin(red + phase).astype(o_ref.dtype)


def _pick_tile_rows(rows: int, row_bytes: int, target_block_bytes: int) -> int:
    """Row-tile size targeting ~target_block_bytes per output block."""
    t = (target_block_bytes // max(row_bytes, 1)) // 8 * 8
    t = max(8, t)
    return rows if rows <= t else t


def positional_encoding_forward(
    x: jax.Array,
    *,
    max_len: int = 5000,
    out_dtype=jnp.float32,        # bf16 halves store bytes if the consumer tolerates it
    target_block_bytes: int = 2 * 1024 * 1024,
) -> jax.Array:
    """Equivalent of _PositionalEncoding(d_model).forward(x) for seq-first x.

    x: (seq_len, batch, d_model).  Returns the (seq_len, batch, d_model)
    sinusoidal table (x values are unused, matching the PyTorch reference);
    the batch axis is a broadcast of a single (S, D) table computed on-chip.
    """
    S, B, D = x.shape
    assert S <= max_len, "seq_len exceeds max_len of the positional table"
    assert D % 2 == 0, "d_model must be even (matches the PyTorch reference)"
    # TODO(synk): x is accepted but unused (the reference forward returns the bare
    # table which the encoder consumes as `pos`); fusing `x + pe` here would be
    # essentially free if the consumer wants the sum instead.

    target_block_bytes = min(int(target_block_bytes), 8 << 20)   # v7x-safe blocks

    # ---- Layout selection (review #2): lane-dense whenever possible. ----
    direct_dense = (D % 128 == 0)
    packed = (not direct_dense) and (D & (D - 1)) == 0 and D < 128 and (S * D) % 128 == 0
    if packed:
        C, rows, rpl = 128, (S * D) // 128, 128 // D      # flat (rows, 128) slab
    else:
        # TODO(synk): if D is neither a power of two nor a multiple of 128 the
        # stores are lane-masked; still correct, just not lane-dense.
        C, rows, rpl = D, S, 1

    # ---- Per-lane constants hoisted out of the kernel (review #7). ----
    lane = jnp.arange(C, dtype=jnp.int32)
    chan = lane % D                                   # channel index of this lane
    pair = (chan // 2) * 2                            # 2*i shared by channels (2i, 2i+1)
    inv_freq = jnp.exp(pair.astype(jnp.float32) * (-math.log(10000.0) / D))[None, :]
    phase = ((chan % 2).astype(jnp.float32) * (0.5 * math.pi))[None, :]
    s_off = (lane // D).astype(jnp.float32)[None, :]  # seq offset of this lane in a row

    # ---- Tiling / VMEM budget (reviews #3, #5). ----
    # TODO(synk): for absurdly wide D (row > ~8 MiB) a second lane-dim grid axis
    # would be needed; not relevant for DiT-sized d_model.
    row_bytes = C * jnp.dtype(out_dtype).itemsize
    tile_rows = _pick_tile_rows(rows, row_bytes, target_block_bytes)
    grid = (pl.cdiv(rows, tile_rows),)                # partial last block is masked by Pallas
    block_bytes = tile_rows * row_bytes
    vmem_limit = int(min(48 << 20, max(16 << 20, 4 * block_bytes)))

    const_spec = pl.BlockSpec((1, C), lambda i: (0, 0))   # resident; DMA'd once
    pe_flat = pl.pallas_call(
        functools.partial(_pe_kernel, rpl=float(rpl)),
        out_shape=jax.ShapeDtypeStruct((rows, C), out_dtype),
        grid_spec=pltpu.PrefetchScalarGridSpec(
            num_scalar_prefetch=0,
            grid=grid,
            in_specs=[const_spec, const_spec, const_spec],
            out_specs=pl.BlockSpec((tile_rows, C), lambda i: (i, 0)),
        ),
        compiler_params=pltpu.CompilerParams(
            dimension_semantics=("parallel",),        # pipelined stores; megacore on v7x
            vmem_limit_bytes=vmem_limit,
        ),
    )(inv_freq, phase, s_off)

    pe = pe_flat.reshape(S, D)                        # free row-major reshape
    # Batch de-duplication (review #1): the kernel never touches B; the broadcast
    # is lazy under jit and fuses into the consumer.
    return jnp.broadcast_to(pe[:, None, :], (S, B, D))


def transformer_encoder_forward(layers, src, pos):
    """Host-level equivalent of _TransformerEncoder.forward.

    Applies each layer (an arbitrary callable, e.g. a jitted / Pallas-backed
    block) sequentially and returns every intermediate output, exactly like
    the PyTorch loop.  TODO(synk): the spec's `base_module` is undefined, so
    the per-layer compute itself cannot be translated to a Pallas kernel here.
    """
    x, outputs = src, []
    for layer in layers:
        x = layer(x, pos)
        outputs.append(x)
    return outputs


def _reference_pe(x: jax.Array) -> jax.Array:
    """Plain-JAX reproduction of the PyTorch __init__ + forward."""
    S, B, D = x.shape
    position = jnp.arange(S, dtype=jnp.float32)[:, None]            # (S, 1)
    div_term = jnp.exp(
        jnp.arange(0, D, 2, dtype=jnp.float32) * (-math.log(10000.0) / D)
    )                                                                # (D//2,)
    pe = jnp.zeros((S, D), jnp.float32)
    pe = pe.at[:, 0::2].set(jnp.sin(position * div_term))
    pe = pe.at[:, 1::2].set(jnp.cos(position * div_term))
    return jnp.tile(pe[:, None, :], (1, B, 1))                       # (S, B, D)


def _check(S, B, D, target_block_bytes=2 * 1024 * 1024):
    key = jax.random.PRNGKey(0)
    x = jax.random.normal(key, (S, B, D), dtype=jnp.float32)
    out = jax.block_until_ready(
        positional_encoding_forward(x, target_block_bytes=target_block_bytes)
    )
    ref = _reference_pe(x)
    assert out.shape == (S, B, D), (out.shape, (S, B, D))
    assert jnp.allclose(out, ref, atol=1e-5, rtol=1e-5), (S, B, D)


if __name__ == "__main__":
    # Primary small shape (seq-first convention): packed lane-dense single block.
    _check(8, 2, 32)
    # Multi-step pipelined grid + Pallas-masked partial last block, packed layout.
    _check(40, 2, 32, target_block_bytes=4096)        # rows=10, tile=8 -> grid=(2,)
    # Fallback layout (D not a power of two / not a multiple of 128), partial block.
    _check(20, 2, 48, target_block_bytes=4096)        # rows=20, tile=16 -> grid=(2,)
    # Lane-dense direct layout (D % 128 == 0).
    _check(16, 2, 128)

    # _TransformerEncoder.forward semantics: loop over layers, collect all outputs.
    x = jax.random.normal(jax.random.PRNGKey(0), (8, 2, 32), dtype=jnp.float32)
    pos = positional_encoding_forward(x)
    layers = [jax.jit(lambda s, p: s + p) for _ in range(2)]   # stand-in layer callables
    outs = transformer_encoder_forward(layers, x, pos)
    assert len(outs) == 2 and outs[-1].shape == x.shape
    jax.block_until_ready(outs[-1])

    print("KERNEL_OK")
</pallas_src>

<mosaic_0001>
module attributes {stable_mosaic.version = 11 : i64} {
  func.func @_pe_kernel(%arg0: i32, %arg1: memref<1x128xf32, #tpu.memory_space<vmem>>, %arg2: memref<1x128xf32, #tpu.memory_space<vmem>>, %arg3: memref<1x128xf32, #tpu.memory_space<vmem>>, %arg4: memref<2x128xf32, #tpu.memory_space<vmem>>) attributes {dimension_semantics = [#tpu.dimension_semantics<parallel>], iteration_bounds = array<i64: 1>, scalar_prefetch = 0 : i64, scratch_operands = 0 : i64, tpu.core_type = #tpu.core_type<tc>, window_params = [{pipeline_mode = #tpu.pipeline_mode<synchronous>, transform_indices = @transform_0, window_bounds = array<i64: 1, 128>}, {pipeline_mode = #tpu.pipeline_mode<synchronous>, transform_indices = @transform_1, window_bounds = array<i64: 1, 128>}, {pipeline_mode = #tpu.pipeline_mode<synchronous>, transform_indices = @transform_2, window_bounds = array<i64: 1, 128>}, {transform_indices = @transform_3, window_bounds = array<i64: 2, 128>}]} {
    %c2_i32 = arith.constant 2 : i32
    %0 = arith.muli %arg0, %c2_i32 : i32
    %1 = arith.sitofp %0 : i32 to f32
    %c0 = arith.constant 0 : index
    %c0_0 = arith.constant 0 : index
    %2 = vector.load %arg1[%c0, %c0_0] : memref<1x128xf32, #tpu.memory_space<vmem>>, vector<1x128xf32>
    %c0_1 = arith.constant 0 : index
    %c0_2 = arith.constant 0 : index
    %3 = vector.load %arg2[%c0_1, %c0_2] : memref<1x128xf32, #tpu.memory_space<vmem>>, vector<1x128xf32>
    %c0_3 = arith.constant 0 : index
    %c0_4 = arith.constant 0 : index
    %4 = vector.load %arg3[%c0_3, %c0_4] : memref<1x128xf32, #tpu.memory_space<vmem>>, vector<1x128xf32>
    %5 = tpu.iota {dimensions = array<i32: 0>} : vector<2x128xi32>
    %6 = arith.sitofp %5 : vector<2x128xi32> to vector<2x128xf32>
    %7 = vector.broadcast %1 : f32 to vector<2x128xf32>
    %8 = arith.addf %6, %7 : vector<2x128xf32>
    %cst = arith.constant 4.000000e+00 : f32
    %9 = vector.broadcast %cst : f32 to vector<2x128xf32>
    %10 = arith.mulf %8, %9 : vector<2x128xf32>
    %11 = vector.broadcast %4 : vector<1x128xf32> to vector<2x128xf32>
    %12 = arith.addf %10, %11 : vector<2x128xf32>
    %13 = vector.broadcast %2 : vector<1x128xf32> to vector<2x128xf32>
    %14 = arith.mulf %12, %13 : vector<2x128xf32>
    %cst_5 = arith.constant 0.159154937 : f32
    %15 = vector.broadcast %cst_5 : f32 to vector<2x128xf32>
    %16 = arith.mulf %14, %15 : vector<2x128xf32>
    %cst_6 = arith.constant 5.000000e-01 : f32
    %17 = vector.broadcast %cst_6 : f32 to vector<2x128xf32>
    %18 = arith.addf %16, %17 : vector<2x128xf32>
    %19 = math.floor %18 : vector<2x128xf32>
    %cst_7 = arith.constant 6.281250e+00 : f32
    %20 = vector.broadcast %cst_7 : f32 to vector<2x128xf32>
    %21 = arith.mulf %19, %20 : vector<2x128xf32>
    %22 = arith.subf %14, %21 : vector<2x128xf32>
    %cst_8 = arith.constant 0.00193530717 : f32
    %23 = vector.broadcast %cst_8 : f32 to vector<2x128xf32>
    %24 = arith.mulf %19, %23 : vector<2x128xf32>
    %25 = arith.subf %22, %24 : vector<2x128xf32>
    %26 = vector.broadcast %3 : vector<1x128xf32> to vector<2x128xf32>
    %27 = arith.addf %25, %26 : vector<2x128xf32>
    %28 = math.sin %27 : vector<2x128xf32>
    %c0_9 = arith.constant 0 : index
    %c0_10 = arith.constant 0 : index
    %29 = vector.load %arg4[%c0_9, %c0_10] : memref<2x128xf32, #tpu.memory_space<vmem>>, vector<2x128xf32>
    tpu.vector_store %arg4[%c0_9, %c0_10], %28 {strides = array<i32>} : memref<2x128xf32, #tpu.memory_space<vmem>>, vector<2x128xf32>,
    return
  }
  func.func @transform_0(%arg0: i32) -> (i32, i32) {
    %c0_i32 = arith.constant 0 : i32
    %c0_i32_0 = arith.constant 0 : i32
    %c0_i32_1 = arith.constant 0 : i32
    return %c0_i32, %c0_i32_0 : i32, i32
  }
  func.func @transform_1(%arg0: i32) -> (i32, i32) {
    %c0_i32 = arith.constant 0 : i32
    %c0_i32_0 = arith.constant 0 : i32
    %c0_i32_1 = arith.constant 0 : i32
    return %c0_i32, %c0_i32_0 : i32, i32
  }
  func.func @transform_2(%arg0: i32) -> (i32, i32) {
    %c0_i32 = arith.constant 0 : i32
    %c0_i32_0 = arith.constant 0 : i32
    %c0_i32_1 = arith.constant 0 : i32
    return %c0_i32, %c0_i32_0 : i32, i32
  }
  func.func @transform_3(%arg0: i32) -> (i32, i32) {
    %c0_i32 = arith.constant 0 : i32
    %c0_i32_0 = arith.constant 0 : i32
    return %arg0, %c0_i32 : i32, i32
  }
}

</mosaic_0001>

<llo_original>
// kernel: tpu_custom_call.1
$region0: #{tpu_custom_call.1}
  #allocation0 [shape = 'u32[]', space=smem, size = 0x4, offset = 0x4, fixed_abs, tag = 'smem constant byte address 0x4 - core index']
  #allocation1 [shape = 'u32[144,128]{1,0:T(1,128)}', space=vmem, size = 0x12000, scoped, tag = 'internal scratch']
  %s0 = inlined_call_operand.hbm [shape: f32[1,128], index: 0, kind: input, shape index: {}]
  %s1 = inlined_call_operand.vmem [shape: f32[1,128], index: 1, kind: input, shape index: {}]
  %s2 = inlined_call_operand.vmem [shape: f32[1,128], index: 2, kind: input, shape index: {}]
  %s3 = inlined_call_operand.hbm [shape: f32[2,128], index: 3, kind: output, shape index: {}]
  %s4 = sld [smem:[#allocation0]]
  $region26: #{tpu_custom_call.1} parent=0
    _
  %s6 = ssub.s32 1, %s4
  %s7 = scalar_select 0, %s6, %s4
  $region1: #{tpu_custom_call.1} parent=0
    #allocation2 [shape = 'u8[512]{0}', space=vmem, size = 0x400, scoped, tag = 'input window, operand 0, single buffered']
    #allocation3 [shape = 's32[1]{0}', space=sflag, size = 0x4, scoped, tag = 'scoped memory for tpu_custom_call.1']
    #allocation4 [shape = 's32[1]{0}', space=sflag, size = 0x4, scoped, tag = 'scoped memory for tpu_custom_call.1']
    #allocation5 [shape = 'u8[1024]{0}', space=vmem, size = 0x400, scoped, tag = 'output window, operand 0, single buffered']
    %8 = vsyncpa [#allocation3], 0
    %9 = vsyncpa [#allocation4], 0
    // Predicated region
    $region2: #{tpu_custom_call.1} parent=1 // pred_check
      _
    $region3: #{tpu_custom_call.1} parent=1 // pred_check_branch
      %11 = sbr.rel (0) target = $region5
    $region4: #{tpu_custom_call.1} parent=1 // pred_region
      %s13 = ssub.s32 16, 16
      %14 = vsyncadd [#allocation3], %s13
      %s16 = sshll.u32 [#allocation2], 4
      %s17 = int_to_ptr.vmem [resolvable:$true] %s16
      %19 = dma.hbm_to_vmem [thread:$0]  %s0, 16, %s17, [#allocation3]
    $region5: #{tpu_custom_call.1} parent=1 // pred_fallthru
      _
    // Predicated region
    $region6: #{tpu_custom_call.1} parent=1 // pred_check
      _
    $region7: #{tpu_custom_call.1} parent=1 // pred_check_branch
      %21 = sbr.rel (0) target = $region9
    $region8: #{tpu_custom_call.1} parent=1 // pred_region
      _
    $region9: #{tpu_custom_call.1} parent=1 // pred_fallthru
      _
    // Predicated region
    $region10: #{tpu_custom_call.1} parent=1 // pred_check
      _
    $region11: #{tpu_custom_call.1} parent=1 // pred_check_branch
      %23 = sbr.rel (0) target = $region13
    $region12: #{tpu_custom_call.1} parent=1 // pred_region
      _
    $region13: #{tpu_custom_call.1} parent=1 // pred_fallthru
      _
    // Predicated region
    $region14: #{tpu_custom_call.1} parent=1 // pred_check
      _
    $region15: #{tpu_custom_call.1} parent=1 // pred_check_branch
      %25 = sbr.rel (0) target = $region17
    $region16: #{tpu_custom_call.1} parent=1 // pred_region
      %26 = dma.done [#allocation3], 16
    $region17: #{tpu_custom_call.1} parent=1 // pred_fallthru
      _
    %s27 = smul.u32 0, 2
    %s28 = scvt.s32.f32 %s27
    %v29 = vld [vmem:[#allocation2] sm:$0x1]
    %v30 = vld [vmem:[%s1] sm:$0x1]
    %v31 = vld [vmem:[%s2] sm:$0x1]
    %v32 = vlaneseq
    %v33 = vshrl.u32 %v32, 7
    %v34 = vcvt.s32.f32 %v33
    %v35 = vstv %s28
    %v36 = vadd.f32 %v34, %v35
    %v37 = vmul.f32 %v36, 4.0
    %v39 = vlaneseq
    %v40 = vshrl.u32 %v39, 7
    %v41 = vsub.s32 0, %v40
    %v42 = vrot.slane %v31, %v41
    %v44 = vadd.f32 %v37, %v42
    %v46 = vlaneseq
    %v47 = vshrl.u32 %v46, 7
    %v48 = vsub.s32 0, %v47
    %v49 = vrot.slane %v29, %v48
    %v51 = vmul.f32 %v44, %v49
    %v52 = vmul.f32 %v51, 0.15915494
    %v53 = vadd.f32 %v52, 0.5
    %v54 = vfloor.f32 %v53
    %v55 = vmul.f32 %v54, 6.28125
    %v56 = vsub.f32 %v51, %v55
    %v57 = vmul.f32 %v54, 0.0019353072
    %v58 = vsub.f32 %v56, %v57
    %v60 = vlaneseq
    %v61 = vshrl.u32 %v60, 7
    %v62 = vsub.s32 0, %v61
    %v63 = vrot.slane %v30, %v62
    %v65 = vadd.f32 %v58, %v63
    %v66 = vand.u32 2147483647, %v65
    %vm67 = vcmp.le.f32.partialorder %v66, 0.7853982
    %vm68 = vcmp.lt.s32.totalorder %v65, 0
    %v69 = vand.u32 %v65, 2139095040
    %v70 = vshrl.u32 %v69, 23
    %v71 = vsub.s32 %v70, 127
    %v72 = vand.u32 2147483647, %v65
    %v73 = vand.u32 %v72, 8388607
    %v74 = vor.u32 %v73, 8388608
    %v75 = vsub.s32 0, %v74
    %v76 = vadd.s32 %v71, 1
    %vm77 = vcmp.gt.s32.totalorder %v76, 0
    %v78 = vsel %vm77, %v76, 0
    %v79 = vshrl.u32 %v78, 5
    %v80 = vand.u32 %v78, 31
    %v81 = vsub.s32 32, %v80
    %v82 = vshrl.u32 683565275, %v81
    %v83 = vshll.u32 683565275, %v80
    %v84 = vshrl.u32 2475754826, %v81
    %v85 = vor.u32 %v83, %v84
    %v86 = vshll.u32 2475754826, %v80
    %v87 = vshrl.u32 2131351028, %v81
    %v88 = vor.u32 %v86, %v87
    %v89 = vshll.u32 2131351028, %v80
    %v90 = vshrl.u32 2102212464, %v81
    %v91 = vor.u32 %v89, %v90
    %v92 = vshll.u32 2102212464, %v80
    %v93 = vshrl.u32 920167782, %v81
    %v94 = vor.u32 %v92, %v93
    %v95 = vshll.u32 920167782, %v80
    %v96 = vshrl.u32 1326507024, %v81
    %v97 = vor.u32 %v95, %v96
    %vm98 = vcmp.lt.s32.totalorder %v79, 1
    %vm99 = vcmp.lt.s32.totalorder %v79, 2
    %vm100 = vcmp.lt.s32.totalorder %v79, 3
    %vm101 = vcmp.lt.s32.totalorder %v79, 4
    %v102 = vsel %vm98, %v82, %v85
    %v103 = vsel %vm101, %v91, 2102212464
    %v104 = vsel %vm100, %v88, %v103
    %v105 = vsel %vm99, %v102, %v104
    %v106 = vsel %vm98, %v85, %v88
    %v107 = vsel %vm101, %v94, 920167782
    %v108 = vsel %vm100, %v91, %v107
    %v109 = vsel %vm99, %v106, %v108
    %v110 = vsel %vm98, %v88, %v91
    %v111 = vsel %vm101, %v97, 1326507024
    %v112 = vsel %vm100, %v94, %v111
    %v113 = vsel %vm99, %v110, %v112
    %v114 = vshll.u32 %v74, 8
    %v115 = vmul.u32.u64.compose %v114, %v113
    %v116 = vextract.low.u32 %v115
    %v117 = vextract.high.u32 %v115
    %v118 = vmul.u32.u64.compose %v114, %v109
    %v119 = vextract.low.u32 %v118
    %v120 = vextract.high.u32 %v118
    %v121 = vmul.u32 %v114, %v105
    %v122 = vadd.s32 %v117, %v119
    %vm123 = vc.u32 %v117, %v119
    %v124 = vadd.s32 %v120, 1
    %v125 = vsel %vm123, %v124, %v120
    %v126 = vadd.s32 %v121, %v125
    %v127 = vadd.s32 %v126, 536870912
    %v128 = vshrl.u32 %v127, 30
    %v129 = vshll.u32 %v128, 30
    %v130 = vsub.s32 %v126, %v129
    %vm131 = vcmp.lt.s32.totalorder %v130, 0
    %v132 = vsub.s32 0, %v130
    %v133 = vsel %vm131, %v132, %v130
    %v134 = vclz %v133
    %v135 = vsub.s32 %v134, 2
    %vm136 = vcmp.gt.s32.totalorder 0, %v135
    %v137 = vsel %vm136, 0, %v135
    %v138 = vsub.s32 32, %v137
    %v139 = vshll.u32 %v130, %v137
    %v140 = vshrl.u32 %v122, %v138
    %v141 = vor.u32 %v139, %v140
    %v142 = vsub.s32 4294967266, %v137
    %v143 = vadd.s32 %v142, 127
    %v144 = vshll.u32 %v143, 23
    %v145 = vor.u32 4788187, %v144
    %v146 = vand.u32 2147483647, %v145
    %v148 = vcvt.s32.f32 %v141
    %v149 = vmul.f32 %v148, %v146
    %v150 = vxor.u32 %v149, 2147483648
    %v151 = vsel %vm68, %v150, %v149
    %v152 = vsub.s32 4, %v128
    %v153 = vsel %vm68, %v152, %v128
    %v154 = vsel %vm67, %v65, %v151
    %v155 = vsel %vm67, 0, %v153
    %v156 = vcosq.f32.pop %v154
    %v157 = vsinq.f32.pop %v154
    %vm158 = vweird.f32 %v65
    %v159 = vadd.s32 %v155, 3
    %v160 = vand.u32 %v159, 3
    %vm161 = vcmp.lt.s32.totalorder %v160, 2
    %vm162 = vcmp.eq.s32.totalorder %v160, 0
    %v163 = vxor.u32 %v157, 2147483648
    %v164 = vsel %vm162, %v156, %v163
    %vm165 = vcmp.eq.s32.totalorder %v160, 2
    %v166 = vxor.u32 %v156, 2147483648
    %v167 = vsel %vm165, %v166, %v157
    %v168 = vsel %vm161, %v164, %v167
    %v169 = vsel %vm158, nan, %v168
    %170 = vst [vmem:[#allocation5] sm:$0x3] %v169
    // Predicated region
    $region18: #{tpu_custom_call.1} parent=1 // pred_check
      _
    $region19: #{tpu_custom_call.1} parent=1 // pred_check_branch
      %172 = sbr.rel (0) target = $region21
    $region20: #{tpu_custom_call.1} parent=1 // pred_region
      %s174 = ssub.s32 32, 32
      %175 = vsyncadd [#allocation4], %s174
      %s177 = sshll.u32 [#allocation5], 4
      %s178 = int_to_ptr.vmem [resolvable:$true] %s177
      %180 = dma.vmem_to_hbm [thread:$0]  %s178, 32, %s3, [#allocation4]
    $region21: #{tpu_custom_call.1} parent=1 // pred_fallthru
      _
    // Predicated region
    $region22: #{tpu_custom_call.1} parent=1 // pred_check
      _
    $region23: #{tpu_custom_call.1} parent=1 // pred_check_branch
      %182 = sbr.rel (0) target = $region25
    $region24: #{tpu_custom_call.1} parent=1 // pred_region
      %183 = dma.done [#allocation4], 32
    $region25: #{tpu_custom_call.1} parent=1 // pred_fallthru
      _
    %184 = vsyncpa [#allocation3], 1
    %185 = vsyncpa [#allocation4], 1

</llo_original>
